<compile_context>
chip_gen: v7x
topology: tpu7x:2x2x1
jax: 0.10.0
libtpu: 0.0.40
codegen_flags: <defaults>
</compile_context>

<pallas_src>
import math
import functools

import jax
import jax.numpy as jnp
from jax.experimental import pallas as pl
from jax.experimental.pallas import tpu as pltpu


def _inverse_mlp_kernel(s_ref, ns_ref, w1s_ref, w1n_ref, b1_ref,
                        w2_ref, b2_ref, w3_ref, b3_ref, out_ref):
    s = s_ref[...]
    ns = ns_ref[...]

    # Layer 1: Linear(2H -> H) + ReLU, concat folded into two MXU dots.
    h1 = jnp.dot(s, w1s_ref[...], preferred_element_type=jnp.float32)
    h1 = h1 + jnp.dot(ns, w1n_ref[...], preferred_element_type=jnp.float32)
    h1 = jnp.maximum(h1 + b1_ref[...], 0.0)

    # Layer 2: Linear(H -> H) + ReLU.
    h2 = jnp.dot(h1, w2_ref[...], preferred_element_type=jnp.float32) + b2_ref[...]
    h2 = jnp.maximum(h2, 0.0)

    # Layer 3: Linear(H -> A_pad) — lane-dense output tile (pad columns are zero).
    out = jnp.dot(h2, w3_ref[...], preferred_element_type=jnp.float32) + b3_ref[...]
    out_ref[...] = out.astype(out_ref.dtype)


@functools.partial(jax.jit, static_argnames=("tb",))
def inverse_module_forward(s_features, ns_features, params, *, tb=512):
    """Pallas forward pass.

    s_features, ns_features: [B, H] float32.
    params: (w1[2H,H], b1[1,H], w2[H,H], b2[1,H], w3[H,A], b3[1,A]).
    Returns [B, A] float32 logits.
    """
    w1, b1, w2, b2, w3, b3 = params
    B, H = s_features.shape
    A = w3.shape[1]

    # --- Fold the concat into two dots: split W1 along its input dim. -----------
    w1_s = w1[:H]          # [H, H]
    w1_n = w1[H:]          # [H, H]

    # --- Lane-dense output: pad A up to a multiple of 128 with zero columns. ----
    A_pad = max(128, ((A + 127) // 128) * 128)
    if A_pad != A:
        w3 = jnp.pad(w3, ((0, 0), (0, A_pad - A)))
        b3 = jnp.pad(b3, ((0, 0), (0, A_pad - A)))

    # --- Batch tiling: single full block for small B, else tiles of `tb` rows. ---
    if B <= tb:
        TB, B_pad = B, B
        s_p, ns_p = s_features, ns_features
    else:
        TB = tb
        B_pad = ((B + TB - 1) // TB) * TB
        s_p = jnp.pad(s_features, ((0, B_pad - B), (0, 0)))
        ns_p = jnp.pad(ns_features, ((0, B_pad - B), (0, 0)))

    grid = (pl.cdiv(B_pad, TB),)

    row_spec = pl.BlockSpec((TB, H), lambda i: (i, 0))
    out_spec = pl.BlockSpec((TB, A_pad), lambda i: (i, 0))
    pinned = lambda shape: pl.BlockSpec(shape, lambda i: (0, 0))  # VMEM-resident

    flops = 2 * B_pad * (2 * H * H + H * H + H * A_pad)
    bytes_accessed = 4 * (2 * B_pad * H + B_pad * A_pad
                          + 2 * H * H + H * H + H * A_pad + 2 * H + A_pad)
    cost = pl.CostEstimate(flops=flops, transcendentals=0,
                           bytes_accessed=bytes_accessed)

    out_padded = pl.pallas_call(
        _inverse_mlp_kernel,
        out_shape=jax.ShapeDtypeStruct((B_pad, A_pad), jnp.float32),
        grid=grid,
        in_specs=[
            row_spec, row_spec,
            pinned(w1_s.shape), pinned(w1_n.shape), pinned(b1.shape),
            pinned(w2.shape), pinned(b2.shape),
            pinned(w3.shape), pinned(b3.shape),
        ],
        out_specs=out_spec,
        compiler_params=pltpu.CompilerParams(
            dimension_semantics=("parallel",)),
        cost_estimate=cost,
    )(s_p, ns_p, w1_s, w1_n, b1, w2, b2, w3, b3)

    return out_padded[:B, :A]


def init_params(key, hidden_dim, action_dim):
    """PyTorch-style (Kaiming-uniform, bound 1/sqrt(fan_in)) init.

    Weights are [in, out] so the kernel does x @ W + b; biases are [1, out].
    """
    dims = [(2 * hidden_dim, hidden_dim),
            (hidden_dim, hidden_dim),
            (hidden_dim, action_dim)]
    params = []
    for fan_in, fan_out in dims:
        key, kw, kb = jax.random.split(key, 3)
        bound = 1.0 / math.sqrt(fan_in)
        w = jax.random.uniform(kw, (fan_in, fan_out), jnp.float32, -bound, bound)
        b = jax.random.uniform(kb, (1, fan_out), jnp.float32, -bound, bound)
        params += [w, b]
    return tuple(params)


def reference_forward(s, ns, params):
    """Plain-JAX reference matching the PyTorch module semantics."""
    w1, b1, w2, b2, w3, b3 = params
    x = jnp.concatenate([s, ns], axis=-1)
    h = jnp.maximum(x @ w1 + b1, 0.0)
    h = jnp.maximum(h @ w2 + b2, 0.0)
    return h @ w3 + b3


if __name__ == "__main__":
    hidden_dim = 32
    action_dim = 4

    key = jax.random.PRNGKey(0)
    k_s, k_ns, k_p, k_s2, k_ns2 = jax.random.split(key, 5)
    params = init_params(k_p, hidden_dim, action_dim)

    # Small-batch path (single full-array block, no grid tiling of rows).
    batch = 8
    s_features = jax.random.normal(k_s, (batch, hidden_dim), jnp.float32)
    ns_features = jax.random.normal(k_ns, (batch, hidden_dim), jnp.float32)
    out = jax.block_until_ready(inverse_module_forward(s_features, ns_features, params))
    ref = reference_forward(s_features, ns_features, params)
    assert out.shape == (batch, action_dim)
    assert jnp.allclose(out, ref, atol=1e-5, rtol=1e-5)

    # Larger-batch path (exercises the row grid + batch padding + parallel axis).
    big_batch = 1000
    s_big = jax.random.normal(k_s2, (big_batch, hidden_dim), jnp.float32)
    ns_big = jax.random.normal(k_ns2, (big_batch, hidden_dim), jnp.float32)
    out_big = jax.block_until_ready(inverse_module_forward(s_big, ns_big, params))
    ref_big = reference_forward(s_big, ns_big, params)
    assert out_big.shape == (big_batch, action_dim)
    assert jnp.allclose(out_big, ref_big, atol=1e-5, rtol=1e-5)

    print("KERNEL_OK")
</pallas_src>

<mosaic_0001>
module attributes {stable_mosaic.version = 11 : i64} {
  func.func @_inverse_mlp_kernel(%arg0: i32, %arg1: memref<8x32xf32, #tpu.memory_space<vmem>>, %arg2: memref<8x32xf32, #tpu.memory_space<vmem>>, %arg3: memref<32x32xf32, #tpu.memory_space<vmem>>, %arg4: memref<32x32xf32, #tpu.memory_space<vmem>>, %arg5: memref<1x32xf32, #tpu.memory_space<vmem>>, %arg6: memref<32x32xf32, #tpu.memory_space<vmem>>, %arg7: memref<1x32xf32, #tpu.memory_space<vmem>>, %arg8: memref<32x128xf32, #tpu.memory_space<vmem>>, %arg9: memref<1x128xf32, #tpu.memory_space<vmem>>, %arg10: memref<8x128xf32, #tpu.memory_space<vmem>>) attributes {dimension_semantics = [#tpu.dimension_semantics<parallel>], iteration_bounds = array<i64: 1>, scalar_prefetch = 0 : i64, scratch_operands = 0 : i64, tpu.core_type = #tpu.core_type<tc>, window_params = [{transform_indices = @transform_0, window_bounds = array<i64: 8, 32>}, {transform_indices = @transform_1, window_bounds = array<i64: 8, 32>}, {pipeline_mode = #tpu.pipeline_mode<synchronous>, transform_indices = @transform_2, window_bounds = array<i64: 32, 32>}, {pipeline_mode = #tpu.pipeline_mode<synchronous>, transform_indices = @transform_3, window_bounds = array<i64: 32, 32>}, {pipeline_mode = #tpu.pipeline_mode<synchronous>, transform_indices = @transform_4, window_bounds = array<i64: 1, 32>}, {pipeline_mode = #tpu.pipeline_mode<synchronous>, transform_indices = @transform_5, window_bounds = array<i64: 32, 32>}, {pipeline_mode = #tpu.pipeline_mode<synchronous>, transform_indices = @transform_6, window_bounds = array<i64: 1, 32>}, {pipeline_mode = #tpu.pipeline_mode<synchronous>, transform_indices = @transform_7, window_bounds = array<i64: 32, 128>}, {pipeline_mode = #tpu.pipeline_mode<synchronous>, transform_indices = @transform_8, window_bounds = array<i64: 1, 128>}, {transform_indices = @transform_9, window_bounds = array<i64: 8, 128>}]} {
    %c0 = arith.constant 0 : index
    %c0_0 = arith.constant 0 : index
    %0 = vector.load %arg1[%c0, %c0_0] : memref<8x32xf32, #tpu.memory_space<vmem>>, vector<8x32xf32>
    %c0_1 = arith.constant 0 : index
    %c0_2 = arith.constant 0 : index
    %1 = vector.load %arg2[%c0_1, %c0_2] : memref<8x32xf32, #tpu.memory_space<vmem>>, vector<8x32xf32>
    %c0_3 = arith.constant 0 : index
    %c0_4 = arith.constant 0 : index
    %2 = vector.load %arg3[%c0_3, %c0_4] : memref<32x32xf32, #tpu.memory_space<vmem>>, vector<32x32xf32>
    %cst = arith.constant dense<0.000000e+00> : vector<8x32xf32>
    %3 = tpu.matmul %0, %2, %cst {dimension_numbers = #tpu.dot_dimension_numbers<[1], [0], [0], [1], [0, 0, 1, 1], [], []>} : vector<8x32xf32>, vector<32x32xf32>, vector<8x32xf32> -> vector<8x32xf32>
    %c0_5 = arith.constant 0 : index
    %c0_6 = arith.constant 0 : index
    %4 = vector.load %arg4[%c0_5, %c0_6] : memref<32x32xf32, #tpu.memory_space<vmem>>, vector<32x32xf32>
    %cst_7 = arith.constant dense<0.000000e+00> : vector<8x32xf32>
    %5 = tpu.matmul %1, %4, %cst_7 {dimension_numbers = #tpu.dot_dimension_numbers<[1], [0], [0], [1], [0, 0, 1, 1], [], []>} : vector<8x32xf32>, vector<32x32xf32>, vector<8x32xf32> -> vector<8x32xf32>
    %6 = arith.addf %3, %5 : vector<8x32xf32>
    %c0_8 = arith.constant 0 : index
    %c0_9 = arith.constant 0 : index
    %7 = vector.load %arg5[%c0_8, %c0_9] : memref<1x32xf32, #tpu.memory_space<vmem>>, vector<1x32xf32>
    %8 = vector.broadcast %7 : vector<1x32xf32> to vector<8x32xf32>
    %9 = arith.addf %6, %8 : vector<8x32xf32>
    %cst_10 = arith.constant 0.000000e+00 : f32
    %10 = vector.broadcast %cst_10 : f32 to vector<8x32xf32>
    %11 = arith.maximumf %9, %10 : vector<8x32xf32>
    %c0_11 = arith.constant 0 : index
    %c0_12 = arith.constant 0 : index
    %12 = vector.load %arg6[%c0_11, %c0_12] : memref<32x32xf32, #tpu.memory_space<vmem>>, vector<32x32xf32>
    %cst_13 = arith.constant dense<0.000000e+00> : vector<8x32xf32>
    %13 = tpu.matmul %11, %12, %cst_13 {dimension_numbers = #tpu.dot_dimension_numbers<[1], [0], [0], [1], [0, 0, 1, 1], [], []>} : vector<8x32xf32>, vector<32x32xf32>, vector<8x32xf32> -> vector<8x32xf32>
    %c0_14 = arith.constant 0 : index
    %c0_15 = arith.constant 0 : index
    %14 = vector.load %arg7[%c0_14, %c0_15] : memref<1x32xf32, #tpu.memory_space<vmem>>, vector<1x32xf32>
    %15 = vector.broadcast %14 : vector<1x32xf32> to vector<8x32xf32>
    %16 = arith.addf %13, %15 : vector<8x32xf32>
    %cst_16 = arith.constant 0.000000e+00 : f32
    %17 = vector.broadcast %cst_16 : f32 to vector<8x32xf32>
    %18 = arith.maximumf %16, %17 : vector<8x32xf32>
    %c0_17 = arith.constant 0 : index
    %c0_18 = arith.constant 0 : index
    %19 = vector.load %arg8[%c0_17, %c0_18] : memref<32x128xf32, #tpu.memory_space<vmem>>, vector<32x128xf32>
    %cst_19 = arith.constant dense<0.000000e+00> : vector<8x128xf32>
    %20 = tpu.matmul %18, %19, %cst_19 {dimension_numbers = #tpu.dot_dimension_numbers<[1], [0], [0], [1], [0, 0, 1, 1], [], []>} : vector<8x32xf32>, vector<32x128xf32>, vector<8x128xf32> -> vector<8x128xf32>
    %c0_20 = arith.constant 0 : index
    %c0_21 = arith.constant 0 : index
    %21 = vector.load %arg9[%c0_20, %c0_21] : memref<1x128xf32, #tpu.memory_space<vmem>>, vector<1x128xf32>
    %22 = vector.broadcast %21 : vector<1x128xf32> to vector<8x128xf32>
    %23 = arith.addf %20, %22 : vector<8x128xf32>
    %c0_22 = arith.constant 0 : index
    %c0_23 = arith.constant 0 : index
    %24 = vector.load %arg10[%c0_22, %c0_23] : memref<8x128xf32, #tpu.memory_space<vmem>>, vector<8x128xf32>
    tpu.vector_store %arg10[%c0_22, %c0_23], %23 {strides = array<i32>} : memref<8x128xf32, #tpu.memory_space<vmem>>, vector<8x128xf32>,
    return
  }
  func.func @transform_0(%arg0: i32) -> (i32, i32) {
    %c0_i32 = arith.constant 0 : i32
    %c0_i32_0 = arith.constant 0 : i32
    return %arg0, %c0_i32 : i32, i32
  }
  func.func @transform_1(%arg0: i32) -> (i32, i32) {
    %c0_i32 = arith.constant 0 : i32
    %c0_i32_0 = arith.constant 0 : i32
    return %arg0, %c0_i32 : i32, i32
  }
  func.func @transform_2(%arg0: i32) -> (i32, i32) {
    %c0_i32 = arith.constant 0 : i32
    %c0_i32_0 = arith.constant 0 : i32
    %c0_i32_1 = arith.constant 0 : i32
    return %c0_i32, %c0_i32_0 : i32, i32
  }
  func.func @transform_3(%arg0: i32) -> (i32, i32) {
    %c0_i32 = arith.constant 0 : i32
    %c0_i32_0 = arith.constant 0 : i32
    %c0_i32_1 = arith.constant 0 : i32
    return %c0_i32, %c0_i32_0 : i32, i32
  }
  func.func @transform_4(%arg0: i32) -> (i32, i32) {
    %c0_i32 = arith.constant 0 : i32
    %c0_i32_0 = arith.constant 0 : i32
    %c0_i32_1 = arith.constant 0 : i32
    return %c0_i32, %c0_i32_0 : i32, i32
  }
  func.func @transform_5(%arg0: i32) -> (i32, i32) {
    %c0_i32 = arith.constant 0 : i32
    %c0_i32_0 = arith.constant 0 : i32
    %c0_i32_1 = arith.constant 0 : i32
    return %c0_i32, %c0_i32_0 : i32, i32
  }
  func.func @transform_6(%arg0: i32) -> (i32, i32) {
    %c0_i32 = arith.constant 0 : i32
    %c0_i32_0 = arith.constant 0 : i32
    %c0_i32_1 = arith.constant 0 : i32
    return %c0_i32, %c0_i32_0 : i32, i32
  }
  func.func @transform_7(%arg0: i32) -> (i32, i32) {
    %c0_i32 = arith.constant 0 : i32
    %c0_i32_0 = arith.constant 0 : i32
    %c0_i32_1 = arith.constant 0 : i32
    return %c0_i32, %c0_i32_0 : i32, i32
  }
  func.func @transform_8(%arg0: i32) -> (i32, i32) {
    %c0_i32 = arith.constant 0 : i32
    %c0_i32_0 = arith.constant 0 : i32
    %c0_i32_1 = arith.constant 0 : i32
    return %c0_i32, %c0_i32_0 : i32, i32
  }
  func.func @transform_9(%arg0: i32) -> (i32, i32) {
    %c0_i32 = arith.constant 0 : i32
    %c0_i32_0 = arith.constant 0 : i32
    return %arg0, %c0_i32 : i32, i32
  }
}

</mosaic_0001>

<llo_original>
// kernel: inverse_module_forward.1
$region0: #{inverse_module_forward.1}
  #allocation0 [shape = 'u32[]', space=smem, size = 0x4, offset = 0x4, fixed_abs, tag = 'smem constant byte address 0x4 - core index']
  #allocation1 [shape = 'u32[144,128]{1,0:T(1,128)}', space=vmem, size = 0x12000, scoped, tag = 'internal scratch']
  %s0 = inlined_call_operand.vmem [shape: f32[8,32], index: 0, kind: input, shape index: {}]
  %s1 = inlined_call_operand.vmem [shape: f32[8,32], index: 1, kind: input, shape index: {}]
  %s2 = inlined_call_operand.vmem [shape: f32[32,32], index: 2, kind: input, shape index: {}]
  %s3 = inlined_call_operand.vmem [shape: f32[32,32], index: 3, kind: input, shape index: {}]
  %s4 = inlined_call_operand.vmem [shape: f32[1,32], index: 4, kind: input, shape index: {}]
  %s5 = inlined_call_operand.vmem [shape: f32[32,32], index: 5, kind: input, shape index: {}]
  %s6 = inlined_call_operand.vmem [shape: f32[1,32], index: 6, kind: input, shape index: {}]
  %s7 = inlined_call_operand.vmem [shape: f32[32,128], index: 7, kind: input, shape index: {}]
  %s8 = inlined_call_operand.vmem [shape: f32[1,128], index: 8, kind: input, shape index: {}]
  %s9 = inlined_call_operand.vmem [shape: f32[8,128], index: 9, kind: output, shape index: {}]
  %s10 = sld [smem:[#allocation0]]
  $region46: #{inverse_module_forward.1} parent=0
    _
  %s12 = ssub.s32 1, %s10
  %s13 = scalar_select 0, %s12, %s10
  // Predicated region
  $region2: #{inverse_module_forward.1} parent=0 // pred_check
    _
  $region3: #{inverse_module_forward.1} parent=0 // pred_check_branch
    %15 = sbr.rel (0) target = $region5
  $region4: #{inverse_module_forward.1} parent=0 // pred_region
    _
  $region5: #{inverse_module_forward.1} parent=0 // pred_fallthru
    _
  // Predicated region
  $region6: #{inverse_module_forward.1} parent=0 // pred_check
    _
  $region7: #{inverse_module_forward.1} parent=0 // pred_check_branch
    %17 = sbr.rel (0) target = $region9
  $region8: #{inverse_module_forward.1} parent=0 // pred_region
    _
  $region9: #{inverse_module_forward.1} parent=0 // pred_fallthru
    _
  // Predicated region
  $region10: #{inverse_module_forward.1} parent=0 // pred_check
    _
  $region11: #{inverse_module_forward.1} parent=0 // pred_check_branch
    %19 = sbr.rel (0) target = $region13
  $region12: #{inverse_module_forward.1} parent=0 // pred_region
    _
  $region13: #{inverse_module_forward.1} parent=0 // pred_fallthru
    _
  // Predicated region
  $region14: #{inverse_module_forward.1} parent=0 // pred_check
    _
  $region15: #{inverse_module_forward.1} parent=0 // pred_check_branch
    %21 = sbr.rel (0) target = $region17
  $region16: #{inverse_module_forward.1} parent=0 // pred_region
    _
  $region17: #{inverse_module_forward.1} parent=0 // pred_fallthru
    _
  // Predicated region
  $region18: #{inverse_module_forward.1} parent=0 // pred_check
    _
  $region19: #{inverse_module_forward.1} parent=0 // pred_check_branch
    %23 = sbr.rel (0) target = $region21
  $region20: #{inverse_module_forward.1} parent=0 // pred_region
    _
  $region21: #{inverse_module_forward.1} parent=0 // pred_fallthru
    _
  // Predicated region
  $region22: #{inverse_module_forward.1} parent=0 // pred_check
    _
  $region23: #{inverse_module_forward.1} parent=0 // pred_check_branch
    %25 = sbr.rel (0) target = $region25
  $region24: #{inverse_module_forward.1} parent=0 // pred_region
    _
  $region25: #{inverse_module_forward.1} parent=0 // pred_fallthru
    _
  // Predicated region
  $region26: #{inverse_module_forward.1} parent=0 // pred_check
    _
  $region27: #{inverse_module_forward.1} parent=0 // pred_check_branch
    %27 = sbr.rel (0) target = $region29
  $region28: #{inverse_module_forward.1} parent=0 // pred_region
    _
  $region29: #{inverse_module_forward.1} parent=0 // pred_fallthru
    _
  // Predicated region
  $region30: #{inverse_module_forward.1} parent=0 // pred_check
    _
  $region31: #{inverse_module_forward.1} parent=0 // pred_check_branch
    %29 = sbr.rel (0) target = $region33
  $region32: #{inverse_module_forward.1} parent=0 // pred_region
    _
  $region33: #{inverse_module_forward.1} parent=0 // pred_fallthru
    _
  // Predicated region
  $region34: #{inverse_module_forward.1} parent=0 // pred_check
    _
  $region35: #{inverse_module_forward.1} parent=0 // pred_check_branch
    %31 = sbr.rel (0) target = $region37
  $region36: #{inverse_module_forward.1} parent=0 // pred_region
    _
  $region37: #{inverse_module_forward.1} parent=0 // pred_fallthru
    _
  %v32 = vld [vmem:[%s0] sm:$0xff]
  %v33 = vld [vmem:[%s1] sm:$0xff]
  %v34 = vld [vmem:[%s2] sm:$0xff]
  %v35 = vld [vmem:[%s2 + $0x8] sm:$0xff]
  %v36 = vld [vmem:[%s2 + $0x10] sm:$0xff]
  %v37 = vld [vmem:[%s2 + $0x18] sm:$0xff]
  %v38 = vld [vmem:[%s3] sm:$0xff]
  %v39 = vld [vmem:[%s3 + $0x8] sm:$0xff]
  %v40 = vld [vmem:[%s3 + $0x10] sm:$0xff]
  %v41 = vld [vmem:[%s3 + $0x18] sm:$0xff]
  %vm42 = vcmask 261120
  %v44 = vsel %vm42, %v33, 0
  %46 = vmatprep.subr.mxu0 0.0
  %47 = vmatpush1.msra.mxu0 %v38
  %48 = vmatprep.subr.mxu0 0.0
  %49 = vmatpush1.msra.mxu0 %v39
  %50 = vmatprep.subr.mxu0 0.0
  %51 = vmatpush1.msra.mxu0 %v40
  %52 = vmatprep.subr.mxu0 0.0
  %53 = vmatpush1.msra.mxu0 %v41
  %54 = vmatprep.subr.mxu0 0.0
  %55 = vmatpush1.msra.mxu0 0.0
  %56 = vmatprep.subr.mxu0 0.0
  %57 = vmatpush1.msra.mxu0 0.0
  %58 = vmatprep.subr.mxu0 0.0
  %59 = vmatpush1.msra.mxu0 0.0
  %60 = vmatprep.subr.mxu0 0.0
  %61 = vmatpush1.msra.mxu0 0.0
  %62 = vmatprep.subr.mxu0 0.0
  %63 = vmatpush1.msra.mxu0 0.0
  %64 = vmatprep.subr.mxu0 0.0
  %65 = vmatpush1.msra.mxu0 0.0
  %66 = vmatprep.subr.mxu0 0.0
  %67 = vmatpush1.msra.mxu0 0.0
  %68 = vmatprep.subr.mxu0 0.0
  %69 = vmatpush1.msra.mxu0 0.0
  %70 = vmatprep.subr.mxu0 0.0
  %71 = vmatpush1.msra.mxu0 0.0
  %72 = vmatprep.subr.mxu0 0.0
  %73 = vmatpush1.msra.mxu0 0.0
  %74 = vmatprep.subr.mxu0 0.0
  %75 = vmatpush1.msra.mxu0 0.0
  %76 = vmatprep.subr.mxu0 0.0
  %77 = vmatpush1.msra.mxu0 0.0
  %78 = vmatprep.subr.mxu0 0.0
  %79 = vmatpush1.msra.mxu0 0.0
  %80 = vmatprep.subr.mxu0 0.0
  %81 = vmatpush1.msra.mxu0 0.0
  %82 = vmatprep.subr.mxu0 0.0
  %83 = vmatpush1.msra.mxu0 0.0
  %84 = vmatprep.subr.mxu0 0.0
  %85 = vmatpush1.msra.mxu0 0.0
  %86 = vmatprep.subr.mxu0 0.0
  %87 = vmatpush1.msra.mxu0 0.0
  %88 = vmatprep.subr.mxu0 0.0
  %89 = vmatpush1.msra.mxu0 0.0
  %90 = vmatprep.subr.mxu0 0.0
  %91 = vmatpush1.msra.mxu0 0.0
  %92 = vmatprep.subr.mxu0 0.0
  %93 = vmatpush1.msra.mxu0 0.0
  %94 = vmatprep.subr.mxu0 0.0
  %95 = vmatpush1.msra.mxu0 0.0
  %96 = vmatprep.subr.mxu0 0.0
  %97 = vmatpush1.msra.mxu0 0.0
  %98 = vmatprep.subr.mxu0 0.0
  %99 = vmatpush1.msra.mxu0 0.0
  %100 = vmatprep.subr.mxu0 0.0
  %101 = vmatpush1.msra.mxu0 0.0
  %102 = vmatprep.subr.mxu0 0.0
  %103 = vmatpush1.msra.mxu0 0.0
  %104 = vmatprep.subr.mxu0 0.0
  %105 = vmatpush1.msra.mxu0 0.0
  %106 = vmatprep.subr.mxu0 0.0
  %107 = vmatpush1.msra.mxu0 0.0
  %108 = vmatprep.subr.mxu0 0.0
  %109 = vmatpush1.msra.mxu0 0.0
  %110 = vmatprep.mubr.f32.mxu0 0.0
  %111 = vmatmul.mubr.f32.gmra.mrb[0].mxu0 %v44
  %v112 = vpop.f32.mrb[0].mxu0
  %v113 = vadd.f32 0.0, %v112
  %v114 = vpop.f32.mrb[0].mxu0
  %115 = vdwg.mxu0
  %v117 = vsel %vm42, %v32, 0
  %119 = vmatprep.subr.mxu0 0.0
  %120 = vmatpush1.msra.mxu0 %v34
  %121 = vmatprep.subr.mxu0 0.0
  %122 = vmatpush1.msra.mxu0 %v35
  %123 = vmatprep.subr.mxu0 0.0
  %124 = vmatpush1.msra.mxu0 %v36
  %125 = vmatprep.subr.mxu0 0.0
  %126 = vmatpush1.msra.mxu0 %v37
  %127 = vmatprep.subr.mxu0 0.0
  %128 = vmatpush1.msra.mxu0 0.0
  %129 = vmatprep.subr.mxu0 0.0
  %130 = vmatpush1.msra.mxu0 0.0
  %131 = vmatprep.subr.mxu0 0.0
  %132 = vmatpush1.msra.mxu0 0.0
  %133 = vmatprep.subr.mxu0 0.0
  %134 = vmatpush1.msra.mxu0 0.0
  %135 = vmatprep.subr.mxu0 0.0
  %136 = vmatpush1.msra.mxu0 0.0
  %137 = vmatprep.subr.mxu0 0.0
  %138 = vmatpush1.msra.mxu0 0.0
  %139 = vmatprep.subr.mxu0 0.0
  %140 = vmatpush1.msra.mxu0 0.0
  %141 = vmatprep.subr.mxu0 0.0
  %142 = vmatpush1.msra.mxu0 0.0
  %143 = vmatprep.subr.mxu0 0.0
  %144 = vmatpush1.msra.mxu0 0.0
  %145 = vmatprep.subr.mxu0 0.0
  %146 = vmatpush1.msra.mxu0 0.0
  %147 = vmatprep.subr.mxu0 0.0
  %148 = vmatpush1.msra.mxu0 0.0
  %149 = vmatprep.subr.mxu0 0.0
  %150 = vmatpush1.msra.mxu0 0.0
  %151 = vmatprep.subr.mxu0 0.0
  %152 = vmatpush1.msra.mxu0 0.0
  %153 = vmatprep.subr.mxu0 0.0
  %154 = vmatpush1.msra.mxu0 0.0
  %155 = vmatprep.subr.mxu0 0.0
  %156 = vmatpush1.msra.mxu0 0.0
  %157 = vmatprep.subr.mxu0 0.0
  %158 = vmatpush1.msra.mxu0 0.0
  %159 = vmatprep.subr.mxu0 0.0
  %160 = vmatpush1.msra.mxu0 0.0
  %161 = vmatprep.subr.mxu0 0.0
  %162 = vmatpush1.msra.mxu0 0.0
  %163 = vmatprep.subr.mxu0 0.0
  %164 = vmatpush1.msra.mxu0 0.0
  %165 = vmatprep.subr.mxu0 0.0
  %166 = vmatpush1.msra.mxu0 0.0
  %167 = vmatprep.subr.mxu0 0.0
  %168 = vmatpush1.msra.mxu0 0.0
  %169 = vmatprep.subr.mxu0 0.0
  %170 = vmatpush1.msra.mxu0 0.0
  %171 = vmatprep.subr.mxu0 0.0
  %172 = vmatpush1.msra.mxu0 0.0
  %173 = vmatprep.subr.mxu0 0.0
  %174 = vmatpush1.msra.mxu0 0.0
  %175 = vmatprep.subr.mxu0 0.0
  %176 = vmatpush1.msra.mxu0 0.0
  %177 = vmatprep.subr.mxu0 0.0
  %178 = vmatpush1.msra.mxu0 0.0
  %179 = vmatprep.subr.mxu0 0.0
  %180 = vmatpush1.msra.mxu0 0.0
  %181 = vmatprep.subr.mxu0 0.0
  %182 = vmatpush1.msra.mxu0 0.0
  %183 = vmatprep.mubr.f32.mxu0 0.0
  %184 = vmatmul.mubr.f32.gmra.mrb[0].mxu0 %v117
  %v185 = vpop.f32.mrb[0].mxu0
  %v186 = vadd.f32 %v113, %v185
  %v187 = vpop.f32.mrb[0].mxu0
  %188 = vdwg.mxu0
  %v189 = vld [vmem:[%s4] sm:$0x1]
  %v191 = vlaneseq
  %v192 = vshrl.u32 %v191, 7
  %v193 = vsub.s32 0, %v192
  %v194 = vrot.slane %v189, %v193
  %v196 = vadd.f32 %v186, %v194
  %v197 = vmax.f32 %v196, 0.0
  %v198 = vld [vmem:[%s5] sm:$0xff]
  %v199 = vld [vmem:[%s5 + $0x8] sm:$0xff]
  %v200 = vld [vmem:[%s5 + $0x10] sm:$0xff]
  %v201 = vld [vmem:[%s5 + $0x18] sm:$0xff]
  %v202 = vld [vmem:[%s6] sm:$0x1]
  %v204 = vlaneseq
  %v205 = vshrl.u32 %v204, 7
  %v206 = vsub.s32 0, %v205
  %v207 = vrot.slane %v202, %v206
  %v210 = vsel %vm42, %v197, 0
  %212 = vmatprep.subr.mxu0 0.0
  %213 = vmatpush1.msra.mxu0 %v198
  %214 = vmatprep.subr.mxu0 0.0
  %215 = vmatpush1.msra.mxu0 %v199
  %216 = vmatprep.subr.mxu0 0.0
  %217 = vmatpush1.msra.mxu0 %v200
  %218 = vmatprep.subr.mxu0 0.0
  %219 = vmatpush1.msra.mxu0 %v201
  %220 = vmatprep.subr.mxu0 0.0
  %221 = vmatpush1.msra.mxu0 0.0
  %222 = vmatprep.subr.mxu0 0.0
  %223 = vmatpush1.msra.mxu0 0.0
  %224 = vmatprep.subr.mxu0 0.0
  %225 = vmatpush1.msra.mxu0 0.0
  %226 = vmatprep.subr.mxu0 0.0
  %227 = vmatpush1.msra.mxu0 0.0
  %228 = vmatprep.subr.mxu0 0.0
  %229 = vmatpush1.msra.mxu0 0.0
  %230 = vmatprep.subr.mxu0 0.0
  %231 = vmatpush1.msra.mxu0 0.0
  %232 = vmatprep.subr.mxu0 0.0
  %233 = vmatpush1.msra.mxu0 0.0
  %234 = vmatprep.subr.mxu0 0.0
  %235 = vmatpush1.msra.mxu0 0.0
  %236 = vmatprep.subr.mxu0 0.0
  %237 = vmatpush1.msra.mxu0 0.0
  %238 = vmatprep.subr.mxu0 0.0
  %239 = vmatpush1.msra.mxu0 0.0
  %240 = vmatprep.subr.mxu0 0.0
  %241 = vmatpush1.msra.mxu0 0.0
  %242 = vmatprep.subr.mxu0 0.0
  %243 = vmatpush1.msra.mxu0 0.0
  %244 = vmatprep.subr.mxu0 0.0
  %245 = vmatpush1.msra.mxu0 0.0
  %246 = vmatprep.subr.mxu0 0.0
  %247 = vmatpush1.msra.mxu0 0.0
  %248 = vmatprep.subr.mxu0 0.0
  %249 = vmatpush1.msra.mxu0 0.0
  %250 = vmatprep.subr.mxu0 0.0
  %251 = vmatpush1.msra.mxu0 0.0
  %252 = vmatprep.subr.mxu0 0.0
  %253 = vmatpush1.msra.mxu0 0.0
  %254 = vmatprep.subr.mxu0 0.0
  %255 = vmatpush1.msra.mxu0 0.0
  %256 = vmatprep.subr.mxu0 0.0
  %257 = vmatpush1.msra.mxu0 0.0
  %258 = vmatprep.subr.mxu0 0.0
  %259 = vmatpush1.msra.mxu0 0.0
  %260 = vmatprep.subr.mxu0 0.0
  %261 = vmatpush1.msra.mxu0 0.0
  %262 = vmatprep.subr.mxu0 0.0
  %263 = vmatpush1.msra.mxu0 0.0
  %264 = vmatprep.subr.mxu0 0.0
  %265 = vmatpush1.msra.mxu0 0.0
  %266 = vmatprep.subr.mxu0 0.0
  %267 = vmatpush1.msra.mxu0 0.0
  %268 = vmatprep.subr.mxu0 0.0
  %269 = vmatpush1.msra.mxu0 0.0
  %270 = vmatprep.subr.mxu0 0.0
  %271 = vmatpush1.msra.mxu0 0.0
  %272 = vmatprep.subr.mxu0 0.0
  %273 = vmatpush1.msra.mxu0 0.0
  %274 = vmatprep.subr.mxu0 0.0
  %275 = vmatpush1.msra.mxu0 0.0
  %276 = vmatprep.mubr.f32.mxu0 0.0
  %277 = vmatmul.mubr.f32.gmra.mrb[0].mxu0 %v210
  %v278 = vpop.f32.mrb[0].mxu0
  %v279 = vadd.f32 %v207, %v278
  %v280 = vpop.f32.mrb[0].mxu0
  %281 = vdwg.mxu0
  %v282 = vmax.f32 %v279, 0.0
  %v283 = vld [vmem:[%s7] sm:$0xff]
  %v284 = vld [vmem:[%s7 + $0x8] sm:$0xff]
  %v285 = vld [vmem:[%s7 + $0x10] sm:$0xff]
  %v286 = vld [vmem:[%s7 + $0x18] sm:$0xff]
  %v287 = vld [vmem:[%s8] sm:$0x1]
  %v289 = vlaneseq
  %v290 = vshrl.u32 %v289, 7
  %v291 = vsub.s32 0, %v290
  %v292 = vrot.slane %v287, %v291
  %v295 = vsel %vm42, %v282, 0
  %297 = vmatprep.subr.mxu0 0.0
  %298 = vmatpush1.msra.mxu0 %v283
  %299 = vmatprep.subr.mxu0 0.0
  %300 = vmatpush1.msra.mxu0 %v284
  %301 = vmatprep.subr.mxu0 0.0
  %302 = vmatpush1.msra.mxu0 %v285
  %303 = vmatprep.subr.mxu0 0.0
  %304 = vmatpush1.msra.mxu0 %v286
  %305 = vmatprep.subr.mxu0 0.0
  %306 = vmatpush1.msra.mxu0 0.0
  %307 = vmatprep.subr.mxu0 0.0
  %308 = vmatpush1.msra.mxu0 0.0
  %309 = vmatprep.subr.mxu0 0.0
  %310 = vmatpush1.msra.mxu0 0.0
  %311 = vmatprep.subr.mxu0 0.0
  %312 = vmatpush1.msra.mxu0 0.0
  %313 = vmatprep.subr.mxu0 0.0
  %314 = vmatpush1.msra.mxu0 0.0
  %315 = vmatprep.subr.mxu0 0.0
  %316 = vmatpush1.msra.mxu0 0.0
  %317 = vmatprep.subr.mxu0 0.0
  %318 = vmatpush1.msra.mxu0 0.0
  %319 = vmatprep.subr.mxu0 0.0
  %320 = vmatpush1.msra.mxu0 0.0
  %321 = vmatprep.subr.mxu0 0.0
  %322 = vmatpush1.msra.mxu0 0.0
  %323 = vmatprep.subr.mxu0 0.0
  %324 = vmatpush1.msra.mxu0 0.0
  %325 = vmatprep.subr.mxu0 0.0
  %326 = vmatpush1.msra.mxu0 0.0
  %327 = vmatprep.subr.mxu0 0.0
  %328 = vmatpush1.msra.mxu0 0.0
  %329 = vmatprep.subr.mxu0 0.0
  %330 = vmatpush1.msra.mxu0 0.0
  %331 = vmatprep.subr.mxu0 0.0
  %332 = vmatpush1.msra.mxu0 0.0
  %333 = vmatprep.subr.mxu0 0.0
  %334 = vmatpush1.msra.mxu0 0.0
  %335 = vmatprep.subr.mxu0 0.0
  %336 = vmatpush1.msra.mxu0 0.0
  %337 = vmatprep.subr.mxu0 0.0
  %338 = vmatpush1.msra.mxu0 0.0
  %339 = vmatprep.subr.mxu0 0.0
  %340 = vmatpush1.msra.mxu0 0.0
  %341 = vmatprep.subr.mxu0 0.0
  %342 = vmatpush1.msra.mxu0 0.0
  %343 = vmatprep.subr.mxu0 0.0
  %344 = vmatpush1.msra.mxu0 0.0
  %345 = vmatprep.subr.mxu0 0.0
  %346 = vmatpush1.msra.mxu0 0.0
  %347 = vmatprep.subr.mxu0 0.0
  %348 = vmatpush1.msra.mxu0 0.0
  %349 = vmatprep.subr.mxu0 0.0
  %350 = vmatpush1.msra.mxu0 0.0
  %351 = vmatprep.subr.mxu0 0.0
  %352 = vmatpush1.msra.mxu0 0.0
  %353 = vmatprep.subr.mxu0 0.0
  %354 = vmatpush1.msra.mxu0 0.0
  %355 = vmatprep.subr.mxu0 0.0
  %356 = vmatpush1.msra.mxu0 0.0
  %357 = vmatprep.subr.mxu0 0.0
  %358 = vmatpush1.msra.mxu0 0.0
  %359 = vmatprep.subr.mxu0 0.0
  %360 = vmatpush1.msra.mxu0 0.0
  %361 = vmatprep.mubr.f32.mxu0 0.0
  %362 = vmatmul.mubr.f32.gmra.mrb[0].mxu0 %v295
  %v363 = vpop.f32.mrb[0].mxu0
  %v364 = vadd.f32 %v292, %v363
  %v365 = vpop.f32.mrb[0].mxu0
  %366 = vdwg.mxu0
  %367 = vst [vmem:[%s9] sm:$0xff] %v364
  // Predicated region
  $region38: #{inverse_module_forward.1} parent=0 // pred_check
    _
  $region39: #{inverse_module_forward.1} parent=0 // pred_check_branch
    %369 = sbr.rel (0) target = $region41
  $region40: #{inverse_module_forward.1} parent=0 // pred_region
    _
  $region41: #{inverse_module_forward.1} parent=0 // pred_fallthru
    _
  // Predicated region
  $region42: #{inverse_module_forward.1} parent=0 // pred_check
    _
  $region43: #{inverse_module_forward.1} parent=0 // pred_check_branch
    %371 = sbr.rel (0) target = $region45
  $region44: #{inverse_module_forward.1} parent=0 // pred_region
    _
  $region45: #{inverse_module_forward.1} parent=0 // pred_fallthru
    _

</llo_original>
